<compile_context>
chip_gen: v7x
topology: tpu7x:2x2x1
jax: 0.10.0
libtpu: 0.0.40
codegen_flags: <defaults>
</compile_context>

<pallas_src>
import jax
import jax.numpy as jnp
from jax.experimental import pallas as pl
from jax.experimental.pallas import tpu as pltpu


def _round_up(x, m):
    return (x + m - 1) // m * m


def _ensemble2_kernel(x_ref, w_ref, b_ref, o_ref, acc_ref):
    # x_ref  : [TM, TK]     bf16 (VMEM)
    # w_ref  : [TK, C_pad]  bf16 (VMEM)   -- already the folded (W1+W2)/2
    # b_ref  : [1,  C_pad]  f32  (VMEM)   -- already the folded (b1+b2)/2
    # o_ref  : [TM, C_pad]  f32  (VMEM)
    # acc_ref: [TM, C_pad]  f32  (VMEM scratch, resident across the K axis)
    k = pl.program_id(1)

    @pl.when(k == 0)
    def _():
        acc_ref[...] = jnp.zeros_like(acc_ref)

    acc_ref[...] += jnp.dot(
        x_ref[...], w_ref[...], preferred_element_type=jnp.float32
    )

    @pl.when(k == pl.num_programs(1) - 1)
    def _():
        o_ref[...] = (acc_ref[...] + b_ref[...]).astype(o_ref.dtype)


def ensemble2_forward(x_nchw, w1, b1, w2, b2):
    """(net1(x) + net2(x)) / 2 with linear sub-nets, fused in one Pallas kernel."""
    B = x_nchw.shape[0]
    D = 1
    for s in x_nchw.shape[1:]:
        D *= s
    C = w1.shape[1]

    # Fold the two linear sub-nets (valid only because net1/net2 are linear).
    w_avg = ((w1.astype(jnp.float32) + w2.astype(jnp.float32)) * 0.5)
    b_avg = ((b1.astype(jnp.float32) + b2.astype(jnp.float32)) * 0.5)

    # Tile sizes / padded shapes.
    TM = 256 if B >= 256 else _round_up(B, 8)          # batch tile (sublane-dense)
    TK = min(_round_up(D, 128), 512)                   # reduction tile over D
    C_pad = _round_up(C, 128)                          # lane-dense class dim
    B_pad = _round_up(B, TM)
    D_pad = _round_up(D, TK)

    # Zero-padded, bf16 operands (padding contributes 0 to the dot).
    x_flat = x_nchw.reshape(B, D).astype(jnp.bfloat16)
    x_p = jnp.zeros((B_pad, D_pad), jnp.bfloat16).at[:B, :D].set(x_flat)
    w_p = jnp.zeros((D_pad, C_pad), jnp.bfloat16).at[:D, :C].set(
        w_avg.astype(jnp.bfloat16)
    )
    b_p = jnp.zeros((1, C_pad), jnp.float32).at[0, :C].set(b_avg)

    grid = (B_pad // TM, D_pad // TK)

    grid_spec = pltpu.PrefetchScalarGridSpec(
        num_scalar_prefetch=0,
        grid=grid,
        in_specs=[
            pl.BlockSpec((TM, TK), lambda i, k: (i, k)),      # x tile
            pl.BlockSpec((TK, C_pad), lambda i, k: (k, 0)),   # folded weights
            pl.BlockSpec((1, C_pad), lambda i, k: (0, 0)),    # folded bias
        ],
        out_specs=pl.BlockSpec((TM, C_pad), lambda i, k: (i, 0)),
        scratch_shapes=[pltpu.VMEM((TM, C_pad), jnp.float32)],
    )

    out_p = pl.pallas_call(
        _ensemble2_kernel,
        out_shape=jax.ShapeDtypeStruct((B_pad, C_pad), jnp.float32),
        grid_spec=grid_spec,
        compiler_params=pltpu.CompilerParams(
            # batch axis parallel (v7x megacore), reduction axis arbitrary (last)
            dimension_semantics=("parallel", "arbitrary"),
            vmem_limit_bytes=64 * 1024 * 1024,
        ),
    )(x_p, w_p, b_p)

    return out_p[:B, :C]


def ensemble2_reference(x_nchw, w1, b1, w2, b2):
    # Evaluates both sub-nets separately, exactly as the PyTorch module does.
    B = x_nchw.shape[0]
    x_flat = x_nchw.reshape(B, -1).astype(jnp.float32)
    out1 = x_flat @ w1 + b1
    out2 = x_flat @ w2 + b2
    return (out1 + out2) / 2.0


if __name__ == "__main__":
    # Small shapes consistent with the module's NCHW image input.
    B, Cin, H, W = 2, 4, 16, 16
    NUM_CLASSES = 10
    D = Cin * H * W

    key = jax.random.PRNGKey(0)
    kx, kw1, kb1, kw2, kb2 = jax.random.split(key, 5)

    x = jax.random.normal(kx, (B, Cin, H, W), dtype=jnp.float32)
    # Deterministic synthetic parameters for the two sub-nets (net1, net2).
    w1 = jax.random.normal(kw1, (D, NUM_CLASSES), dtype=jnp.float32) * 0.02
    b1 = jax.random.normal(kb1, (NUM_CLASSES,), dtype=jnp.float32) * 0.1
    w2 = jax.random.normal(kw2, (D, NUM_CLASSES), dtype=jnp.float32) * 0.02
    b2 = jax.random.normal(kb2, (NUM_CLASSES,), dtype=jnp.float32) * 0.1

    out = ensemble2_forward(x, w1, b1, w2, b2)
    out = jax.block_until_ready(out)

    ref = ensemble2_reference(x, w1, b1, w2, b2)
    assert out.shape == (B, NUM_CLASSES), out.shape
    # bf16 operands -> relaxed tolerance on logits (fp32 accumulation).
    assert jnp.allclose(out, ref, atol=2e-2, rtol=2e-2), "mismatch vs reference"

    print("KERNEL_OK")
</pallas_src>

<mosaic_0001>
module attributes {stable_mosaic.version = 11 : i64} {
  func.func @_ensemble2_kernel(%arg0: i32, %arg1: i32, %arg2: memref<8x512xbf16, #tpu.memory_space<vmem>>, %arg3: memref<512x128xbf16, #tpu.memory_space<vmem>>, %arg4: memref<1x128xf32, #tpu.memory_space<vmem>>, %arg5: memref<8x128xf32, #tpu.memory_space<vmem>>, %arg6: memref<8x128xf32, #tpu.memory_space<vmem>>) attributes {dimension_semantics = [#tpu.dimension_semantics<parallel>, #tpu.dimension_semantics<arbitrary>], iteration_bounds = array<i64: 1, 2>, scalar_prefetch = 0 : i64, scratch_operands = 1 : i64, tpu.core_type = #tpu.core_type<tc>, window_params = [{transform_indices = @transform_0, window_bounds = array<i64: 8, 512>}, {transform_indices = @transform_1, window_bounds = array<i64: 512, 128>}, {pipeline_mode = #tpu.pipeline_mode<synchronous>, transform_indices = @transform_2, window_bounds = array<i64: 1, 128>}, {transform_indices = @transform_3, window_bounds = array<i64: 8, 128>}]} {
    %c0_i32 = arith.constant 0 : i32
    %0 = arith.cmpi eq, %arg1, %c0_i32 : i32
    %1 = arith.extui %0 : i1 to i32
    %c0_i32_0 = arith.constant 0 : i32
    %2 = arith.cmpi ne, %1, %c0_i32_0 : i32
    scf.if %2 {
      %cst_9 = arith.constant 0.000000e+00 : f32
      %12 = vector.broadcast %cst_9 : f32 to vector<8x128xf32>
      %c0_10 = arith.constant 0 : index
      %c0_11 = arith.constant 0 : index
      %13 = vector.load %arg6[%c0_10, %c0_11] : memref<8x128xf32, #tpu.memory_space<vmem>>, vector<8x128xf32>
      tpu.vector_store %arg6[%c0_10, %c0_11], %12 {strides = array<i32>} : memref<8x128xf32, #tpu.memory_space<vmem>>, vector<8x128xf32>,
    } else {
    }
    %c0 = arith.constant 0 : index
    %c0_1 = arith.constant 0 : index
    %3 = vector.load %arg6[%c0, %c0_1] : memref<8x128xf32, #tpu.memory_space<vmem>>, vector<8x128xf32>
    %c0_2 = arith.constant 0 : index
    %c0_3 = arith.constant 0 : index
    %4 = vector.load %arg2[%c0_2, %c0_3] : memref<8x512xbf16, #tpu.memory_space<vmem>>, vector<8x512xbf16>
    %c0_4 = arith.constant 0 : index
    %c0_5 = arith.constant 0 : index
    %5 = vector.load %arg3[%c0_4, %c0_5] : memref<512x128xbf16, #tpu.memory_space<vmem>>, vector<512x128xbf16>
    %cst = arith.constant dense<0.000000e+00> : vector<8x128xf32>
    %6 = tpu.matmul %4, %5, %cst {dimension_numbers = #tpu.dot_dimension_numbers<[1], [0], [0], [1], [0, 0, 1, 1], [], []>} : vector<8x512xbf16>, vector<512x128xbf16>, vector<8x128xf32> -> vector<8x128xf32>
    %7 = arith.addf %3, %6 : vector<8x128xf32>
    %c0_6 = arith.constant 0 : index
    %c0_7 = arith.constant 0 : index
    %8 = vector.load %arg6[%c0_6, %c0_7] : memref<8x128xf32, #tpu.memory_space<vmem>>, vector<8x128xf32>
    tpu.vector_store %arg6[%c0_6, %c0_7], %7 {strides = array<i32>} : memref<8x128xf32, #tpu.memory_space<vmem>>, vector<8x128xf32>,
    %c1_i32 = arith.constant 1 : i32
    %9 = arith.cmpi eq, %arg1, %c1_i32 : i32
    %10 = arith.extui %9 : i1 to i32
    %c0_i32_8 = arith.constant 0 : i32
    %11 = arith.cmpi ne, %10, %c0_i32_8 : i32
    scf.if %11 {
      %c0_9 = arith.constant 0 : index
      %c0_10 = arith.constant 0 : index
      %12 = vector.load %arg6[%c0_9, %c0_10] : memref<8x128xf32, #tpu.memory_space<vmem>>, vector<8x128xf32>
      %c0_11 = arith.constant 0 : index
      %c0_12 = arith.constant 0 : index
      %13 = vector.load %arg4[%c0_11, %c0_12] : memref<1x128xf32, #tpu.memory_space<vmem>>, vector<1x128xf32>
      %14 = vector.broadcast %13 : vector<1x128xf32> to vector<8x128xf32>
      %15 = arith.addf %12, %14 : vector<8x128xf32>
      %c0_13 = arith.constant 0 : index
      %c0_14 = arith.constant 0 : index
      %16 = vector.load %arg5[%c0_13, %c0_14] : memref<8x128xf32, #tpu.memory_space<vmem>>, vector<8x128xf32>
      tpu.vector_store %arg5[%c0_13, %c0_14], %15 {strides = array<i32>} : memref<8x128xf32, #tpu.memory_space<vmem>>, vector<8x128xf32>,
    } else {
    }
    return
  }
  func.func @transform_0(%arg0: i32, %arg1: i32) -> (i32, i32) {
    %c0_i32 = arith.constant 0 : i32
    return %arg0, %arg1 : i32, i32
  }
  func.func @transform_1(%arg0: i32, %arg1: i32) -> (i32, i32) {
    %c0_i32 = arith.constant 0 : i32
    %c0_i32_0 = arith.constant 0 : i32
    return %arg1, %c0_i32 : i32, i32
  }
  func.func @transform_2(%arg0: i32, %arg1: i32) -> (i32, i32) {
    %c0_i32 = arith.constant 0 : i32
    %c0_i32_0 = arith.constant 0 : i32
    %c0_i32_1 = arith.constant 0 : i32
    return %c0_i32, %c0_i32_0 : i32, i32
  }
  func.func @transform_3(%arg0: i32, %arg1: i32) -> (i32, i32) {
    %c0_i32 = arith.constant 0 : i32
    %c0_i32_0 = arith.constant 0 : i32
    return %arg0, %c0_i32 : i32, i32
  }
}

</mosaic_0001>

<llo_original>
// kernel: tpu_custom_call.1
$region0: #{tpu_custom_call.1}
  #allocation0 [shape = 'u32[]', space=smem, size = 0x4, offset = 0x4, fixed_abs, tag = 'smem constant byte address 0x4 - core index']
  #allocation1 [shape = 'u32[144,128]{1,0:T(1,128)}', space=vmem, size = 0x12000, scoped, tag = 'internal scratch']
  #allocation2 [shape = 'f32[8,128]{1,0:T(8,128)}', space=vmem, size = 0x1000, scoped, tag = 'scratch operand']
  %s0 = inlined_call_operand.hbm [shape: bf16[8,1024], index: 0, kind: input, shape index: {}]
  %s1 = inlined_call_operand.hbm [shape: bf16[1024,128], index: 1, kind: input, shape index: {}]
  %s2 = inlined_call_operand.hbm [shape: f32[1,128], index: 2, kind: input, shape index: {}]
  %s3 = inlined_call_operand.hbm [shape: f32[8,128], index: 3, kind: output, shape index: {}]
  %s4 = sld [smem:[#allocation0]]
  $region65: #{tpu_custom_call.1} parent=0
    _
  %s6 = ssub.s32 1, %s4
  %s7 = scalar_select 0, %s6, %s4
  $region1: #{tpu_custom_call.1} parent=0
    #allocation3 [shape = 'u8[16384]{0}', space=vmem, size = 0x4000, scoped, tag = 'input window, operand 0']
    #allocation4 [shape = 's32[2]{0}', space=sflag, size = 0x8, scoped, tag = 'scoped memory for tpu_custom_call.1']
    #allocation5 [shape = 's32[2]{0}', space=sflag, size = 0x8, scoped, tag = 'scoped memory for tpu_custom_call.1']
    #allocation6 [shape = 'u8[262144]{0}', space=vmem, size = 0x40000, scoped, tag = 'input window, operand 1']
    #allocation7 [shape = 's32[2]{0}', space=sflag, size = 0x8, scoped, tag = 'scoped memory for tpu_custom_call.1']
    #allocation8 [shape = 'u8[512]{0}', space=vmem, size = 0x400, scoped, tag = 'input window, operand 2, single buffered']
    #allocation9 [shape = 'u8[4096]{0}', space=vmem, size = 0x1000, scoped, tag = 'output window, operand 0, single buffered']
    %8 = vsyncpa [#allocation4], 0
    %s9 = scalar_lea.sflag [#allocation4], 1
    %10 = vsyncpa %s9, 0
    %11 = vsyncpa [#allocation7], 0
    %s12 = scalar_lea.sflag [#allocation7], 1
    %13 = vsyncpa %s12, 0
    %14 = vsyncpa [#allocation5], 0
    loop: start=0, step=1, limit=4
    $region2: #{tpu_custom_call.1} parent=1 // loop_pre_header
      _
    $region3: #{tpu_custom_call.1} parent=1 // loop_header
      %s16 = sphi 0, %s20
      %p17 = scmp.ge.s32.totalorder %s16, 4
      %s23 = sphi 0, %s35
      %s24 = sphi 0, %s31
      %s25 = sphi 0, %s23
      %s26 = sphi 0, %s24
      %s27 = sphi 0, %s25
      %s28 = sphi 0, %s26
      %s40 = sphi 0, %s42
      %s43 = sphi 0, %s40
      %s44 = sphi 0, %s43
      %s60 = sphi 0, %s44
      %s66 = sphi 0, %s68
      %s69 = sphi 0, %s66
      %s70 = sphi 0, %s69
      %s86 = sphi 0, %s70
      %s90 = sphi 0, %s90
      %s92 = sphi 0, %s90
      %s93 = sphi 0, %s92
      %s107 = sphi 0, %s93
      %s113 = sphi 0, %s115
      %s116 = sphi 0, %s113
      %s117 = sphi 0, %s116
      %s133 = sphi 0, %s117
    $region4: #{tpu_custom_call.1} parent=1 // loop_header_branch
      %19 = sbr.rel (%p17) target = $region8
    $region5: #{tpu_custom_call.1} parent=1 // loop_body
      %s21 = ssub.s32 %s16, 1
      %s22 = ssub.s32 %s16, 2
      %s29 = sadd.s32 1, %s24
      %p30 = scmp.ge.s32.totalorder %s29, 2
      %s31 = scalar_select %p30, 0, %s29
      %s32 = sadd.s32 1, %s23
      %s33 = scalar_select %p30, %s32, %s23
      %p34 = scmp.ge.s32.totalorder %s33, 1
      %s35 = scalar_select %p34, 0, %s33
      %s36 = ssub.s32 %s23, %s35
      %s37 = ssub.s32 %s24, %s31
      %s38 = sor.u32 %s36, %s37
      %p39 = scmp.eq.s32.totalorder %s38, 0
      %s41 = sadd.s32 %s40, 1
      %s42 = scalar_select %p39, %s40, %s41
      %p45 = pneg %p39
      %p46 = scmp.eq.s32.totalorder %s16, 1
      %p47 = por %p45, %p46
      %p48 = scmp.ne.s32.totalorder %s40, %s43
      %p49 = scmp.eq.s32.totalorder %s16, 0
      %p50 = por %p48, %p49
      %p51 = scmp.ne.s32.totalorder %s40, %s43
      %p52 = scmp.eq.s32.totalorder %s21, 1
      %p53 = por %p51, %p52
      %p54 = scmp.ne.s32.totalorder %s43, %s44
      %p55 = scmp.eq.s32.totalorder %s21, 0
      %p56 = por %p54, %p55
      %p57 = scmp.ne.s32.totalorder %s43, %s44
      %p58 = scmp.eq.s32.totalorder %s22, 1
      %p59 = por %p57, %p58
      %p61 = scmp.ne.s32.totalorder %s44, %s60
      %p62 = scmp.eq.s32.totalorder %s22, 0
      %p63 = por %p61, %p62
      %s64 = ssub.s32 %s24, %s31
      %p65 = scmp.eq.s32.totalorder %s64, 0
      %s67 = sadd.s32 %s66, 1
      %s68 = scalar_select %p65, %s66, %s67
      %p71 = pneg %p65
      %p72 = scmp.eq.s32.totalorder %s16, 1
      %p73 = por %p71, %p72
      %p74 = scmp.ne.s32.totalorder %s66, %s69
      %p75 = scmp.eq.s32.totalorder %s16, 0
      %p76 = por %p74, %p75
      %p77 = scmp.ne.s32.totalorder %s66, %s69
      %p78 = scmp.eq.s32.totalorder %s21, 1
      %p79 = por %p77, %p78
      %p80 = scmp.ne.s32.totalorder %s69, %s70
      %p81 = scmp.eq.s32.totalorder %s21, 0
      %p82 = por %p80, %p81
      %p83 = scmp.ne.s32.totalorder %s69, %s70
      %p84 = scmp.eq.s32.totalorder %s22, 1
      %p85 = por %p83, %p84
      %p87 = scmp.ne.s32.totalorder %s70, %s86
      %p88 = scmp.eq.s32.totalorder %s22, 0
      %p89 = por %p87, %p88
      %s91 = sadd.s32 %s90, 1
      %p94 = scmp.eq.s32.totalorder %s16, 1
      %p95 = scmp.ne.s32.totalorder %s90, %s92
      %p96 = scmp.eq.s32.totalorder %s16, 0
      %p97 = por %p95, %p96
      %p98 = scmp.ne.s32.totalorder %s90, %s92
      %p99 = scmp.eq.s32.totalorder %s21, 1
      %p100 = por %p98, %p99
      %p101 = scmp.ne.s32.totalorder %s92, %s93
      %p102 = scmp.eq.s32.totalorder %s21, 0
      %p103 = por %p101, %p102
      %p104 = scmp.ne.s32.totalorder %s92, %s93
      %p105 = scmp.eq.s32.totalorder %s22, 1
      %p106 = por %p104, %p105
      %p108 = scmp.ne.s32.totalorder %s93, %s107
      %p109 = scmp.eq.s32.totalorder %s22, 0
      %p110 = por %p108, %p109
      %s111 = ssub.s32 %s23, %s35
      %p112 = scmp.eq.s32.totalorder %s111, 0
      %s114 = sadd.s32 %s113, 1
      %s115 = scalar_select %p112, %s113, %s114
      %p118 = pneg %p112
      %p119 = scmp.eq.s32.totalorder %s16, 1
      %p120 = por %p118, %p119
      %p121 = scmp.ne.s32.totalorder %s113, %s116
      %p122 = scmp.eq.s32.totalorder %s16, 0
      %p123 = por %p121, %p122
      %p124 = scmp.ne.s32.totalorder %s113, %s116
      %p125 = scmp.eq.s32.totalorder %s21, 1
      %p126 = por %p124, %p125
      %p127 = scmp.ne.s32.totalorder %s116, %s117
      %p128 = scmp.eq.s32.totalorder %s21, 0
      %p129 = por %p127, %p128
      %p130 = scmp.ne.s32.totalorder %s116, %s117
      %p131 = scmp.eq.s32.totalorder %s22, 1
      %p132 = por %p130, %p131
      %p134 = scmp.ne.s32.totalorder %s117, %s133
      %p135 = scmp.eq.s32.totalorder %s22, 0
      %p136 = por %p134, %p135
      %p137 = scmp.le.s32.totalorder 1, %s16
      %p138 = scmp.lt.s32.totalorder %s16, 3
      %p139 = pnand %p137, %p138
      %p140 = pneg %p139
      // Predicated region
      $region9: #{tpu_custom_call.1} parent=5 // pred_check
        _
      $region10: #{tpu_custom_call.1} parent=5 // pred_check_branch
        %142 = sbr.rel (%p139) target = $region12
      $region11: #{tpu_custom_call.1} parent=5 // pred_region
        %s143 = ssub.s32 %s16, 1
        // Predicated region
        $region13: #{tpu_custom_call.1} parent=11 // pred_check
          %p144 = pneg %p103
        $region14: #{tpu_custom_call.1} parent=11 // pred_check_branch
          %146 = sbr.rel (%p144) target = $region16
        $region15: #{tpu_custom_call.1} parent=11 // pred_region
          %s148 = ssub.s32 16, 16
          %149 = vsyncadd [#allocation7], %s148
          %s151 = sshll.u32 [#allocation8], 4
          %s152 = int_to_ptr.vmem [resolvable:$true] %s151
          %154 = dma.hbm_to_vmem [thread:$0]  %s2, 16, %s152, [#allocation7]
        $region16: #{tpu_custom_call.1} parent=11 // pred_fallthru
          _
      $region12: #{tpu_custom_call.1} parent=5 // pred_fallthru
        _
      %p155 = scmp.lt.s32.totalorder %s16, 2
      // Predicated region
      $region17: #{tpu_custom_call.1} parent=5 // pred_check
        %p156 = pneg %p155
      $region18: #{tpu_custom_call.1} parent=5 // pred_check_branch
        %158 = sbr.rel (%p156) target = $region20
      $region19: #{tpu_custom_call.1} parent=5 // pred_region
        // Predicated region
        $region21: #{tpu_custom_call.1} parent=19 // pred_check
          %p159 = pneg %p50
        $region22: #{tpu_custom_call.1} parent=19 // pred_check_branch
          %161 = sbr.rel (%p159) target = $region24
        $region23: #{tpu_custom_call.1} parent=19 // pred_region
          %s162 = sand.u32 %s40, 1
          %s163 = scalar_lea.sflag [#allocation4], %s162
          %s164 = sand.u32 %s40, 1
          %s165 = smul.addr %s164, 16
          %s166 = scalar_lea.vmem [#allocation3], %s165
          %s167 = smul.u32 4, %s24
          %s169 = ssub.s32 256, 256
          %170 = vsyncadd %s163, %s169
          %s171 = smul.addr %s23, 8
          %s172 = sadd.s32 %s167, %s171
          %s173 = smul.addr %s172, 64
          %s174 = scalar_lea.hbm %s0, %s173
          %s176 = sshll.u32 %s166, 4
          %s177 = int_to_ptr.vmem [resolvable:$true] %s176
          %179 = dma.hbm_to_vmem [thread:$0]  %s174, 256, %s177, %s163
        $region24: #{tpu_custom_call.1} parent=19 // pred_fallthru
          _
        // Predicated region
        $region25: #{tpu_custom_call.1} parent=19 // pred_check
          %p180 = pneg %p76
        $region26: #{tpu_custom_call.1} parent=19 // pred_check_branch
          %182 = sbr.rel (%p180) target = $region28
        $region27: #{tpu_custom_call.1} parent=19 // pred_region
          %s183 = sand.u32 %s16, 1
          %s184 = scalar_lea.sflag [#allocation7], %s183
          %s185 = sand.u32 %s66, 1
          %s186 = smul.addr %s185, 256
          %s187 = scalar_lea.vmem [#allocation6], %s186
          %s188 = smul.u32 64, %s24
          %s190 = ssub.s32 4096, 4096
          %191 = vsyncadd %s184, %s190
          %s192 = smul.addr %s188, 64
          %s193 = scalar_lea.hbm %s1, %s192
          %s194 = sshll.u32 %s187, 4
          %s195 = int_to_ptr.vmem [resolvable:$true] %s194
          %200 = dma.hbm_to_vmem [thread:$0]  %s193, 4096, %s195, %s184, 64, 64, 4
        $region28: #{tpu_custom_call.1} parent=19 // pred_fallthru
          _
      $region20: #{tpu_custom_call.1} parent=5 // pred_fallthru
        _
      %p201 = scmp.le.s32.totalorder 1, %s16
      %p202 = scmp.lt.s32.totalorder %s16, 3
      %p203 = pnand %p201, %p202
      %p204 = pneg %p203
      // Predicated region
      $region29: #{tpu_custom_call.1} parent=5 // pred_check
        _
      $region30: #{tpu_custom_call.1} parent=5 // pred_check_branch
        %206 = sbr.rel (%p203) target = $region32
      $region31: #{tpu_custom_call.1} parent=5 // pred_region
        %s207 = ssub.s32 %s16, 1
        %s208 = sand.u32 %s43, 1
        %s209 = scalar_lea.sflag [#allocation4], %s208
        %s210 = sand.u32 %s43, 1
        %s211 = smul.addr %s210, 16
        %s212 = scalar_lea.vmem [#allocation3], %s211
        // Predicated region
        $region33: #{tpu_custom_call.1} parent=31 // pred_check
          %p213 = pneg %p56
        $region34: #{tpu_custom_call.1} parent=31 // pred_check_branch
          %215 = sbr.rel (%p213) target = $region36
        $region35: #{tpu_custom_call.1} parent=31 // pred_region
          %216 = dma.done %s209, 256
        $region36: #{tpu_custom_call.1} parent=31 // pred_fallthru
          _
        %s217 = sand.u32 %s21, 1
        %s218 = scalar_lea.sflag [#allocation7], %s217
        %s219 = sand.u32 %s69, 1
        %s220 = smul.addr %s219, 256
        %s221 = scalar_lea.vmem [#allocation6], %s220
        // Predicated region
        $region37: #{tpu_custom_call.1} parent=31 // pred_check
          %p222 = pneg %p82
        $region38: #{tpu_custom_call.1} parent=31 // pred_check_branch
          %224 = sbr.rel (%p222) target = $region40
        $region39: #{tpu_custom_call.1} parent=31 // pred_region
          %225 = dma.done %s218, 4096
        $region40: #{tpu_custom_call.1} parent=31 // pred_fallthru
          _
        // Predicated region
        $region41: #{tpu_custom_call.1} parent=31 // pred_check
          %p226 = pneg %p103
        $region42: #{tpu_custom_call.1} parent=31 // pred_check_branch
          %228 = sbr.rel (%p226) target = $region44
        $region43: #{tpu_custom_call.1} parent=31 // pred_region
          %229 = dma.done [#allocation7], 16
        $region44: #{tpu_custom_call.1} parent=31 // pred_fallthru
          _
        %s230 = sand.u32 %s43, 1
        %s231 = scalar_lea.sflag [#allocation4], %s230
        %s232 = sand.u32 %s43, 1
        %s233 = smul.addr %s232, 16
        %s234 = scalar_lea.vmem [#allocation3], %s233
        %p235 = pneg %p56
        %p236 = pneg %p53
        %s237 = sand.u32 %s21, 1
        %s238 = scalar_lea.sflag [#allocation7], %s237
        %s239 = sand.u32 %s69, 1
        %s240 = smul.addr %s239, 256
        %s241 = scalar_lea.vmem [#allocation6], %s240
        %p242 = pneg %p82
        %p243 = pneg %p79
        %p244 = pneg %p103
        %p245 = pneg %p100
        %p246 = pneg %p129
        %p247 = pneg %p126
        %s248 = smul.u32 4, %s26
        %s249 = smul.u32 64, %s26
        %p251 = scmp.eq.s32.totalorder %s26, 0
        // Predicated region
        $region45: #{tpu_custom_call.1} parent=31 // pred_check
          %p252 = pneg %p251
        $region46: #{tpu_custom_call.1} parent=31 // pred_check_branch
          %254 = sbr.rel (%p252) target = $region48
        $region47: #{tpu_custom_call.1} parent=31 // pred_region
          %255 = vst [vmem:[#allocation2] sm:$0xff] 0.0
        $region48: #{tpu_custom_call.1} parent=31 // pred_fallthru
          _
        %v256 = vld [vmem:[#allocation2] sm:$0xff]
        %v257 = vld [vmem:[%s212] sm:$0xff]
        %v258 = vld [vmem:[%s212 + $0x8] sm:$0xff]
        %v259 = vld [vmem:[%s221] sm:$0xf]
        %v260 = vld [vmem:[%s221 + $0x4] sm:$0xf]
        %v261 = vld [vmem:[%s221 + $0x8] sm:$0xf]
        %v262 = vld [vmem:[%s221 + $0xc] sm:$0xf]
        %v263 = vld [vmem:[%s221 + $0x10] sm:$0xf]
        %v264 = vld [vmem:[%s221 + $0x14] sm:$0xf]
        %v265 = vld [vmem:[%s221 + $0x18] sm:$0xf]
        %v266 = vld [vmem:[%s221 + $0x1c] sm:$0xf]
        %v267 = vld [vmem:[%s221 + $0x20] sm:$0xf]
        %v268 = vld [vmem:[%s221 + $0x24] sm:$0xf]
        %v269 = vld [vmem:[%s221 + $0x28] sm:$0xf]
        %v270 = vld [vmem:[%s221 + $0x2c] sm:$0xf]
        %v271 = vld [vmem:[%s221 + $0x30] sm:$0xf]
        %v272 = vld [vmem:[%s221 + $0x34] sm:$0xf]
        %v273 = vld [vmem:[%s221 + $0x38] sm:$0xf]
        %v274 = vld [vmem:[%s221 + $0x3c] sm:$0xf]
        %v275 = vld [vmem:[%s221 + $0x40] sm:$0xf]
        %v276 = vld [vmem:[%s221 + $0x44] sm:$0xf]
        %v277 = vld [vmem:[%s221 + $0x48] sm:$0xf]
        %v278 = vld [vmem:[%s221 + $0x4c] sm:$0xf]
        %v279 = vld [vmem:[%s221 + $0x50] sm:$0xf]
        %v280 = vld [vmem:[%s221 + $0x54] sm:$0xf]
        %v281 = vld [vmem:[%s221 + $0x58] sm:$0xf]
        %v282 = vld [vmem:[%s221 + $0x5c] sm:$0xf]
        %v283 = vld [vmem:[%s221 + $0x60] sm:$0xf]
        %v284 = vld [vmem:[%s221 + $0x64] sm:$0xf]
        %v285 = vld [vmem:[%s221 + $0x68] sm:$0xf]
        %v286 = vld [vmem:[%s221 + $0x6c] sm:$0xf]
        %v287 = vld [vmem:[%s221 + $0x70] sm:$0xf]
        %v288 = vld [vmem:[%s221 + $0x74] sm:$0xf]
        %v289 = vld [vmem:[%s221 + $0x78] sm:$0xf]
        %v290 = vld [vmem:[%s221 + $0x7c] sm:$0xf]
        %v291 = vld [vmem:[%s221 + $0x80] sm:$0xf]
        %v292 = vld [vmem:[%s221 + $0x84] sm:$0xf]
        %v293 = vld [vmem:[%s221 + $0x88] sm:$0xf]
        %v294 = vld [vmem:[%s221 + $0x8c] sm:$0xf]
        %v295 = vld [vmem:[%s221 + $0x90] sm:$0xf]
        %v296 = vld [vmem:[%s221 + $0x94] sm:$0xf]
        %v297 = vld [vmem:[%s221 + $0x98] sm:$0xf]
        %v298 = vld [vmem:[%s221 + $0x9c] sm:$0xf]
        %v299 = vld [vmem:[%s221 + $0xa0] sm:$0xf]
        %v300 = vld [vmem:[%s221 + $0xa4] sm:$0xf]
        %v301 = vld [vmem:[%s221 + $0xa8] sm:$0xf]
        %v302 = vld [vmem:[%s221 + $0xac] sm:$0xf]
        %v303 = vld [vmem:[%s221 + $0xb0] sm:$0xf]
        %v304 = vld [vmem:[%s221 + $0xb4] sm:$0xf]
        %v305 = vld [vmem:[%s221 + $0xb8] sm:$0xf]
        %v306 = vld [vmem:[%s221 + $0xbc] sm:$0xf]
        %v307 = vld [vmem:[%s221 + $0xc0] sm:$0xf]
        %v308 = vld [vmem:[%s221 + $0xc4] sm:$0xf]
        %v309 = vld [vmem:[%s221 + $0xc8] sm:$0xf]
        %v310 = vld [vmem:[%s221 + $0xcc] sm:$0xf]
        %v311 = vld [vmem:[%s221 + $0xd0] sm:$0xf]
        %v312 = vld [vmem:[%s221 + $0xd4] sm:$0xf]
        %v313 = vld [vmem:[%s221 + $0xd8] sm:$0xf]
        %v314 = vld [vmem:[%s221 + $0xdc] sm:$0xf]
        %v315 = vld [vmem:[%s221 + $0xe0] sm:$0xf]
        %v316 = vld [vmem:[%s221 + $0xe4] sm:$0xf]
        %v317 = vld [vmem:[%s221 + $0xe8] sm:$0xf]
        %v318 = vld [vmem:[%s221 + $0xec] sm:$0xf]
        %v319 = vld [vmem:[%s221 + $0xf0] sm:$0xf]
        %v320 = vld [vmem:[%s221 + $0xf4] sm:$0xf]
        %v321 = vld [vmem:[%s221 + $0xf8] sm:$0xf]
        %v322 = vld [vmem:[%s221 + $0xfc] sm:$0xf]
        %v325 = vunpack.c.l.b16 %v257
        %v326 = vunpack.c.h.b16 %v257
        %v327 = vunpack.c.l.b16 %v258
        %v328 = vunpack.c.h.b16 %v258
        %v329 = vpack.c.b16 %v325, %v325
        %v330 = vpack.c.b16 %v326, %v326
        %v331 = vpack.c.b16 %v327, %v327
        %v332 = vpack.c.b16 %v328, %v328
        %v401 = vunpack.c.l.b16 %v259
        %v402 = vunpack.c.l.b16 %v260
        %v403 = vunpack.c.l.b16 %v261
        %v404 = vunpack.c.l.b16 %v262
        %v405 = vunpack.c.l.b16 %v263
        %v406 = vunpack.c.l.b16 %v264
        %v407 = vunpack.c.l.b16 %v265
        %v408 = vunpack.c.l.b16 %v266
        %v409 = vunpack.c.l.b16 %v267
        %v410 = vunpack.c.l.b16 %v268
        %v411 = vunpack.c.l.b16 %v269
        %v412 = vunpack.c.l.b16 %v270
        %v413 = vunpack.c.l.b16 %v271
        %v414 = vunpack.c.l.b16 %v272
        %v415 = vunpack.c.l.b16 %v273
        %v416 = vunpack.c.l.b16 %v274
        %v417 = vunpack.c.l.b16 %v275
        %v418 = vunpack.c.l.b16 %v276
        %v419 = vunpack.c.l.b16 %v277
        %v420 = vunpack.c.l.b16 %v278
        %v421 = vunpack.c.l.b16 %v279
        %v422 = vunpack.c.l.b16 %v280
        %v423 = vunpack.c.l.b16 %v281
        %v424 = vunpack.c.l.b16 %v282
        %v425 = vunpack.c.l.b16 %v283
        %v426 = vunpack.c.l.b16 %v284
        %v427 = vunpack.c.l.b16 %v285
        %v428 = vunpack.c.l.b16 %v286
        %v429 = vunpack.c.l.b16 %v287
        %v430 = vunpack.c.l.b16 %v288
        %v431 = vunpack.c.l.b16 %v289
        %v432 = vunpack.c.l.b16 %v290
        %v433 = vunpack.c.l.b16 %v291
        %v434 = vunpack.c.l.b16 %v292
        %v435 = vunpack.c.l.b16 %v293
        %v436 = vunpack.c.l.b16 %v294
        %v437 = vunpack.c.l.b16 %v295
        %v438 = vunpack.c.l.b16 %v296
        %v439 = vunpack.c.l.b16 %v297
        %v440 = vunpack.c.l.b16 %v298
        %v441 = vunpack.c.l.b16 %v299
        %v442 = vunpack.c.l.b16 %v300
        %v443 = vunpack.c.l.b16 %v301
        %v444 = vunpack.c.l.b16 %v302
        %v445 = vunpack.c.l.b16 %v303
        %v446 = vunpack.c.l.b16 %v304
        %v447 = vunpack.c.l.b16 %v305
        %v448 = vunpack.c.l.b16 %v306
        %v449 = vunpack.c.l.b16 %v307
        %v450 = vunpack.c.l.b16 %v308
        %v451 = vunpack.c.l.b16 %v309
        %v452 = vunpack.c.l.b16 %v310
        %v453 = vunpack.c.l.b16 %v311
        %v454 = vunpack.c.l.b16 %v312
        %v455 = vunpack.c.l.b16 %v313
        %v456 = vunpack.c.l.b16 %v314
        %v457 = vunpack.c.l.b16 %v315
        %v458 = vunpack.c.l.b16 %v316
        %v459 = vunpack.c.l.b16 %v317
        %v460 = vunpack.c.l.b16 %v318
        %v461 = vunpack.c.l.b16 %v319
        %v462 = vunpack.c.l.b16 %v320
        %v463 = vunpack.c.l.b16 %v321
        %v464 = vunpack.c.l.b16 %v322
        %v465 = vpack.c.b16 %v402, %v401
        %v466 = vpack.c.b16 %v404, %v403
        %v467 = vpack.c.b16 %v406, %v405
        %v468 = vpack.c.b16 %v408, %v407
        %v469 = vpack.c.b16 %v410, %v409
        %v470 = vpack.c.b16 %v412, %v411
        %v471 = vpack.c.b16 %v414, %v413
        %v472 = vpack.c.b16 %v416, %v415
        %v473 = vpack.c.b16 %v418, %v417
        %v474 = vpack.c.b16 %v420, %v419
        %v475 = vpack.c.b16 %v422, %v421
        %v476 = vpack.c.b16 %v424, %v423
        %v477 = vpack.c.b16 %v426, %v425
        %v478 = vpack.c.b16 %v428, %v427
        %v479 = vpack.c.b16 %v430, %v429
        %v480 = vpack.c.b16 %v432, %v431
        %v481 = vpack.c.b16 %v434, %v433
        %v482 = vpack.c.b16 %v436, %v435
        %v483 = vpack.c.b16 %v438, %v437
        %v484 = vpack.c.b16 %v440, %v439
        %v485 = vpack.c.b16 %v442, %v441
        %v486 = vpack.c.b16 %v444, %v443
        %v487 = vpack.c.b16 %v446, %v445
        %v488 = vpack.c.b16 %v448, %v447
        %v489 = vpack.c.b16 %v450, %v449
        %v490 = vpack.c.b16 %v452, %v451
        %v491 = vpack.c.b16 %v454, %v453
        %v492 = vpack.c.b16 %v456, %v455
        %v493 = vpack.c.b16 %v458, %v457
        %v494 = vpack.c.b16 %v460, %v459
        %v495 = vpack.c.b16 %v462, %v461
        %v496 = vpack.c.b16 %v464, %v463
        %529 = vmatprep.subr.bf16.mxu0 0
        %530 = vmatpush1.bf16.msra.mxu0 %v465
        %531 = vmatprep.subr.bf16.mxu0 0
        %532 = vmatpush1.bf16.msra.mxu0 %v466
        %533 = vmatprep.subr.bf16.mxu0 0
        %534 = vmatpush1.bf16.msra.mxu0 %v467
        %535 = vmatprep.subr.bf16.mxu0 0
        %536 = vmatpush1.bf16.msra.mxu0 %v468
        %537 = vmatprep.subr.bf16.mxu0 0
        %538 = vmatpush1.bf16.msra.mxu0 %v469
        %539 = vmatprep.subr.bf16.mxu0 0
        %540 = vmatpush1.bf16.msra.mxu0 %v470
        %541 = vmatprep.subr.bf16.mxu0 0
        %542 = vmatpush1.bf16.msra.mxu0 %v471
        %543 = vmatprep.subr.bf16.mxu0 0
        %544 = vmatpush1.bf16.msra.mxu0 %v472
        %545 = vmatprep.subr.bf16.mxu0 0
        %546 = vmatpush1.bf16.msra.mxu0 %v473
        %547 = vmatprep.subr.bf16.mxu0 0
        %548 = vmatpush1.bf16.msra.mxu0 %v474
        %549 = vmatprep.subr.bf16.mxu0 0
        %550 = vmatpush1.bf16.msra.mxu0 %v475
        %551 = vmatprep.subr.bf16.mxu0 0
        %552 = vmatpush1.bf16.msra.mxu0 %v476
        %553 = vmatprep.subr.bf16.mxu0 0
        %554 = vmatpush1.bf16.msra.mxu0 %v477
        %555 = vmatprep.subr.bf16.mxu0 0
        %556 = vmatpush1.bf16.msra.mxu0 %v478
        %557 = vmatprep.subr.bf16.mxu0 0
        %558 = vmatpush1.bf16.msra.mxu0 %v479
        %559 = vmatprep.subr.bf16.mxu0 0
        %560 = vmatpush1.bf16.msra.mxu0 %v480
        %561 = vmatprep.mubr.bf16.mxu0 %v330
        %562 = vmatmul.mubr.bf16.gmra.mrb[0].mxu0 %v329
        %v563 = vpop.f32.mrb[0].mxu0
        %v564 = vadd.f32 0.0, %v563
        %v565 = vpop.f32.mrb[0].mxu0
        %v566 = vpop.f32.mrb[0].mxu0
        %v567 = vpop.f32.mrb[0].mxu0
        %568 = vdwg.mxu0
        %569 = vmatprep.subr.bf16.mxu0 0
        %570 = vmatpush1.bf16.msra.mxu0 %v481
        %571 = vmatprep.subr.bf16.mxu0 0
        %572 = vmatpush1.bf16.msra.mxu0 %v482
        %573 = vmatprep.subr.bf16.mxu0 0
        %574 = vmatpush1.bf16.msra.mxu0 %v483
        %575 = vmatprep.subr.bf16.mxu0 0
        %576 = vmatpush1.bf16.msra.mxu0 %v484
        %577 = vmatprep.subr.bf16.mxu0 0
        %578 = vmatpush1.bf16.msra.mxu0 %v485
        %579 = vmatprep.subr.bf16.mxu0 0
        %580 = vmatpush1.bf16.msra.mxu0 %v486
        %581 = vmatprep.subr.bf16.mxu0 0
        %582 = vmatpush1.bf16.msra.mxu0 %v487
        %583 = vmatprep.subr.bf16.mxu0 0
        %584 = vmatpush1.bf16.msra.mxu0 %v488
        %585 = vmatprep.subr.bf16.mxu0 0
        %586 = vmatpush1.bf16.msra.mxu0 %v489
        %587 = vmatprep.subr.bf16.mxu0 0
        %588 = vmatpush1.bf16.msra.mxu0 %v490
        %589 = vmatprep.subr.bf16.mxu0 0
        %590 = vmatpush1.bf16.msra.mxu0 %v491
        %591 = vmatprep.subr.bf16.mxu0 0
        %592 = vmatpush1.bf16.msra.mxu0 %v492
        %593 = vmatprep.subr.bf16.mxu0 0
        %594 = vmatpush1.bf16.msra.mxu0 %v493
        %595 = vmatprep.subr.bf16.mxu0 0
        %596 = vmatpush1.bf16.msra.mxu0 %v494
        %597 = vmatprep.subr.bf16.mxu0 0
        %598 = vmatpush1.bf16.msra.mxu0 %v495
        %599 = vmatprep.subr.bf16.mxu0 0
        %600 = vmatpush1.bf16.msra.mxu0 %v496
        %601 = vmatprep.mubr.bf16.mxu0 %v332
        %602 = vmatmul.mubr.bf16.gmra.mrb[0].mxu0 %v331
        %v603 = vpop.f32.mrb[0].mxu0
        %v604 = vadd.f32 %v564, %v603
        %v605 = vpop.f32.mrb[0].mxu0
        %v606 = vpop.f32.mrb[0].mxu0
        %v607 = vpop.f32.mrb[0].mxu0
        %608 = vdwg.mxu0
        %v609 = vadd.f32 %v256, %v604
        %610 = vst [vmem:[#allocation2] sm:$0xff] %v609
        %p611 = scmp.eq.s32.totalorder %s26, 1
        // Predicated region
        $region49: #{tpu_custom_call.1} parent=31 // pred_check
          %p612 = pneg %p611
        $region50: #{tpu_custom_call.1} parent=31 // pred_check_branch
          %614 = sbr.rel (%p612) target = $region52
        $region51: #{tpu_custom_call.1} parent=31 // pred_region
          %v615 = vld [vmem:[#allocation2] sm:$0xff]
          %v616 = vld [vmem:[#allocation8] sm:$0x1]
          %v618 = vlaneseq
          %v619 = vshrl.u32 %v618, 7
          %v620 = vsub.s32 0, %v619
          %v621 = vrot.slane %v616, %v620
          %v623 = vadd.f32 %v615, %v621
          %624 = vst [vmem:[#allocation9] sm:$0xff] %v623
        $region52: #{tpu_custom_call.1} parent=31 // pred_fallthru
          _
        // Predicated region
        $region53: #{tpu_custom_call.1} parent=31 // pred_check
          %p625 = pneg %p126
        $region54: #{tpu_custom_call.1} parent=31 // pred_check_branch
          %627 = sbr.rel (%p625) target = $region56
        $region55: #{tpu_custom_call.1} parent=31 // pred_region
          %s629 = ssub.s32 128, 128
          %630 = vsyncadd [#allocation5], %s629
          %s631 = smul.addr %s25, 128
          %s632 = scalar_lea.hbm %s3, %s631
          %s634 = sshll.u32 [#allocation9], 4
          %s635 = int_to_ptr.vmem [resolvable:$true] %s634
          %637 = dma.vmem_to_hbm [thread:$0]  %s635, 128, %s632, [#allocation5]
        $region56: #{tpu_custom_call.1} parent=31 // pred_fallthru
          _
        // Predicated region
        $region57: #{tpu_custom_call.1} parent=31 // pred_check
          %p638 = pneg %p126
        $region58: #{tpu_custom_call.1} parent=31 // pred_check_branch
          %640 = sbr.rel (%p638) target = $region60
        $region59: #{tpu_custom_call.1} parent=31 // pred_region
          %641 = dma.done [#allocation5], 128
        $region60: #{tpu_custom_call.1} parent=31 // pred_fallthru
          _
      $region32: #{tpu_custom_call.1} parent=5 // pred_fallthru
        _
      %p642 = scmp.le.s32.totalorder 2, %s16
      // Predicated region
      $region61: #{tpu_custom_call.1} parent=5 // pred_check
        %p643 = pneg %p642
      $region62: #{tpu_custom_call.1} parent=5 // pred_check_branch
        %645 = sbr.rel (%p643) target = $region64
      $region63: #{tpu_custom_call.1} parent=5 // pred_region
        %s646 = ssub.s32 %s16, 2
      $region64: #{tpu_custom_call.1} parent=5 // pred_fallthru
        _
    $region6: #{tpu_custom_call.1} parent=1 // loop_footer
      %s20 = sadd.s32 1, %s16
    $region7: #{tpu_custom_call.1} parent=1 // loop_footer_branch
      %15 = sbr.rel target = $region3
    $region8: #{tpu_custom_call.1} parent=1 // loop_exit
      _
    %647 = vsyncpa [#allocation4], 1
    %s648 = scalar_lea.sflag [#allocation4], 1
    %649 = vsyncpa %s648, 1
    %650 = vsyncpa [#allocation7], 1
    %s651 = scalar_lea.sflag [#allocation7], 1
    %652 = vsyncpa %s651, 1
    %653 = vsyncpa [#allocation5], 1
    %s654 = scalar_lea.sflag [#allocation5], 1
    %655 = vsyncpa %s654, 1

</llo_original>
